<compile_context>
chip_gen: v5e
topology: v5e:2x2
jax: 0.10.0
libtpu: 0.0.40
codegen_flags: <defaults>
</compile_context>

<pallas_src>
import functools

import jax
import jax.numpy as jnp
import numpy as np
from jax.experimental import pallas as pl
from jax.experimental.pallas import tpu as pltpu

_LEAKY_SLOPE = 0.1  # nn.LeakyReLU(0.1) in the module spec
_BN_EPS = 1e-5      # PyTorch BatchNorm1d default


# --------------------------------------------------------------------------
# Kernel
# --------------------------------------------------------------------------
def _residual_block_kernel(x_ref, w1r_ref, sh1r_ref, w2_ref, sh2_ref, o_ref,
                           *, total_rows, block_rows, mask_tail):
    """One batch tile: fused [Linear1|Linear_r] -> split -> Linear2 -> add."""
    fout = o_ref.shape[-1]

    x = x_ref[...]                                     # (TM, Fin) f32 from HBM
    if mask_tail:
        # cdiv grid: the last tile reads past the end of x; zero those rows so
        # no garbage (possibly Inf/NaN) flows through the compute.  The writes
        # for those rows are masked by Pallas anyway.
        row = jax.lax.broadcasted_iota(jnp.int32, x.shape, 0)
        row = row + pl.program_id(0) * block_rows
        x = jnp.where(row < total_rows, x, 0.0)

    # In-kernel cast to the matmul dtype (bf16 by default); hidden under DMA.
    x = x.astype(w1r_ref.dtype)

    # Fused first matmul: columns [0:Fout)      = Linear1 * BN1-scale
    #                     columns [Fout:2*Fout) = Linear_r * BNr-scale
    # N = 2*Fout = 128 -> lane-dense MXU result; f32 accumulation.
    h_full = jnp.dot(x, w1r_ref[...], preferred_element_type=jnp.float32)
    h_full = h_full + sh1r_ref[...]                    # folded (bias*scale+shift)

    # Lane split at 64; MXU/VPU have huge slack here, so this is fine.
    h1 = h_full[:, :fout]                              # block branch, pre-act
    r = h_full[:, fout:]                               # residual branch (done)

    # LeakyReLU(0.1); Dropout(0.3) is identity in eval mode.
    h1 = jnp.where(h1 > 0, h1, _LEAKY_SLOPE * h1)

    # Linear2 (+ folded BN2), f32 accumulation; f32 epilogue (v5e-safe).
    h2 = jnp.dot(h1.astype(w2_ref.dtype), w2_ref[...],
                 preferred_element_type=jnp.float32)
    h2 = h2 + sh2_ref[...]
    h2 = jnp.where(h2 > 0, h2, _LEAKY_SLOPE * h2)

    o_ref[...] = (h2 + r).astype(o_ref.dtype)


# --------------------------------------------------------------------------
# One-time parameter preparation (hoisted out of the per-call path)
# --------------------------------------------------------------------------
def _bn_fold(gamma, beta, running_mean, running_var, eps=_BN_EPS):
    """Fold eval-mode BatchNorm1d into per-feature (scale, shift)."""
    scale = gamma / jnp.sqrt(running_var + eps)
    shift = beta - running_mean * scale
    return scale, shift


def fold_params(params, matmul_dtype=jnp.bfloat16):
    """Fold BN + biases into weights / shift rows.  Call ONCE, reuse per call.

    Returns (w1r, sh1r, w2p, sh2r):
      w1r  (Fin, 2*Fout) matmul_dtype : [Linear1*s1 | Linear_r*sr]
      sh1r (1,  2*Fout)  f32          : [b1*s1+t1   | br*sr+tr]
      w2p  (Fout, Fout)  matmul_dtype : Linear2*s2
      sh2r (1,  Fout)    f32          : b2*s2+t2
    """
    s1, t1 = _bn_fold(params["bn1_gamma"], params["bn1_beta"],
                      params["bn1_mean"], params["bn1_var"])
    s2, t2 = _bn_fold(params["bn2_gamma"], params["bn2_beta"],
                      params["bn2_mean"], params["bn2_var"])
    sr, tr = _bn_fold(params["bnr_gamma"], params["bnr_beta"],
                      params["bnr_mean"], params["bnr_var"])

    w1p = params["w1"] * s1[None, :]
    sh1 = params["b1"] * s1 + t1
    wrp = params["wr"] * sr[None, :]
    shr = params["br"] * sr + tr
    w2p = params["w2"] * s2[None, :]
    sh2 = params["b2"] * s2 + t2

    w1r = jnp.concatenate([w1p, wrp], axis=1).astype(matmul_dtype)   # (Fin, 2F)
    sh1r = jnp.concatenate([sh1, shr])[None, :].astype(jnp.float32)  # (1, 2F)
    w2p = w2p.astype(matmul_dtype)                                   # (F, F)
    sh2r = sh2[None, :].astype(jnp.float32)                          # (1, F)
    return w1r, sh1r, w2p, sh2r


# --------------------------------------------------------------------------
# Forward (jitted; contains only the pallas_call)
# --------------------------------------------------------------------------
def _round_up(x, m):
    return (x + m - 1) // m * m


def _cdiv(a, b):
    return (a + b - 1) // b


@functools.partial(jax.jit,
                   static_argnames=("tile_m", "out_dtype", "split_for_megacore"))
def residual_block_forward(x, w1r, sh1r, w2p, sh2r, *,
                           tile_m=4096, out_dtype=jnp.float32,
                           split_for_megacore=True):
    """x: (B, in_features) f32 -> (B, out_features) out_dtype (eval forward)."""
    B, Fin = x.shape
    Fout = w2p.shape[1]

    # Batch tile: as large as possible (amortize per-grid-step overhead),
    # multiple of 8 sublanes.  Ragged B handled via cdiv grid (no padding).
    TM = _round_up(max(8, min(tile_m, _round_up(B, 8))), 8)
    # v7x megacore: if everything fits in one tile, split into >=2 grid steps
    # so both TensorCores get work ("parallel" batch axis).  No-op on v5e/v6e.
    if split_for_megacore and B >= 16 and _cdiv(B, TM) < 2:
        TM = _round_up(_cdiv(B, 2), 8)

    grid = (_cdiv(B, TM),)
    kernel = functools.partial(
        _residual_block_kernel,
        total_rows=B, block_rows=TM, mask_tail=(B % TM != 0))

    return pl.pallas_call(
        kernel,
        out_shape=jax.ShapeDtypeStruct((B, Fout), out_dtype),
        grid=grid,
        in_specs=[
            pl.BlockSpec((TM, Fin), lambda i: (i, 0)),    # x: tiled over batch
            pl.BlockSpec(w1r.shape, lambda i: (0, 0)),    # weights: resident
            pl.BlockSpec(sh1r.shape, lambda i: (0, 0)),
            pl.BlockSpec(w2p.shape, lambda i: (0, 0)),
            pl.BlockSpec(sh2r.shape, lambda i: (0, 0)),
        ],
        out_specs=pl.BlockSpec((TM, Fout), lambda i: (i, 0)),
        compiler_params=pltpu.CompilerParams(
            dimension_semantics=("parallel",),
            vmem_limit_bytes=32 * 1024 * 1024,            # TM=8192 uses ~6 MiB
        ),
    )(x, w1r, sh1r, w2p, sh2r)


# --------------------------------------------------------------------------
# Parameter init (PyTorch defaults) + pure-JAX reference
# --------------------------------------------------------------------------
def init_params(key, in_features, out_features):
    """Deterministic init matching PyTorch Linear defaults; BN stats are made
    non-trivial (random running mean/var, gamma/beta) so the fold is exercised."""
    ks = jax.random.split(key, 12)

    def linear_init(kw, kb, fan_in, fan_out):
        bound = 1.0 / np.sqrt(fan_in)
        w = jax.random.uniform(kw, (fan_in, fan_out), jnp.float32, -bound, bound)
        b = jax.random.uniform(kb, (fan_out,), jnp.float32, -bound, bound)
        return w, b

    w1, b1 = linear_init(ks[0], ks[1], in_features, out_features)
    w2, b2 = linear_init(ks[2], ks[3], out_features, out_features)
    wr, br = linear_init(ks[4], ks[5], in_features, out_features)

    def bn(kg, kb2, km, kv):
        return dict(
            gamma=1.0 + 0.1 * jax.random.normal(kg, (out_features,), jnp.float32),
            beta=0.1 * jax.random.normal(kb2, (out_features,), jnp.float32),
            mean=0.1 * jax.random.normal(km, (out_features,), jnp.float32),
            var=1.0 + 0.1 * jax.random.uniform(kv, (out_features,), jnp.float32),
        )

    bn1 = bn(ks[6], ks[7], ks[8], ks[9])
    bn2 = bn(ks[10], ks[11], ks[6], ks[7])
    bnr = bn(ks[8], ks[9], ks[10], ks[11])
    return dict(
        w1=w1, b1=b1,
        bn1_gamma=bn1["gamma"], bn1_beta=bn1["beta"],
        bn1_mean=bn1["mean"], bn1_var=bn1["var"],
        w2=w2, b2=b2,
        bn2_gamma=bn2["gamma"], bn2_beta=bn2["beta"],
        bn2_mean=bn2["mean"], bn2_var=bn2["var"],
        wr=wr, br=br,
        bnr_gamma=bnr["gamma"], bnr_beta=bnr["beta"],
        bnr_mean=bnr["mean"], bnr_var=bnr["var"],
    )


def _reference_forward(x, p):
    """Pure-JAX f32 reference (same eval-mode semantics)."""
    lrelu = lambda v: jnp.where(v > 0, v, _LEAKY_SLOPE * v)

    def bn(v, g, b, m, var):
        return (v - m) / jnp.sqrt(var + _BN_EPS) * g + b

    h = lrelu(bn(x @ p["w1"] + p["b1"], p["bn1_gamma"], p["bn1_beta"],
                 p["bn1_mean"], p["bn1_var"]))
    h = lrelu(bn(h @ p["w2"] + p["b2"], p["bn2_gamma"], p["bn2_beta"],
                 p["bn2_mean"], p["bn2_var"]))
    r = bn(x @ p["wr"] + p["br"], p["bnr_gamma"], p["bnr_beta"],
           p["bnr_mean"], p["bnr_var"])
    return h + r


if __name__ == "__main__":
    # Shapes consistent with the module: in_features != out_features so the
    # projection residual branch is exercised.
    B, IN_F, OUT_F = 8, 32, 64

    key = jax.random.PRNGKey(0)
    kx, kp, kx2 = jax.random.split(key, 3)
    x = jax.random.normal(kx, (B, IN_F), jnp.float32)
    params = init_params(kp, IN_F, OUT_F)
    ref = _reference_forward(x, params)

    # 1) f32 matmul path + f32 output: tight correctness check (folding only
    #    reorders FP ops).
    prep_f32 = fold_params(params, jnp.float32)
    out_f32 = jax.block_until_ready(
        residual_block_forward(x, *prep_f32, out_dtype=jnp.float32))
    np.testing.assert_allclose(np.asarray(out_f32), np.asarray(ref),
                               rtol=1e-4, atol=1e-4)

    # 2) production path: bf16 matmuls (f32 accumulation) + bf16 output.
    prep_bf16 = fold_params(params, jnp.bfloat16)
    out_bf16 = jax.block_until_ready(
        residual_block_forward(x, *prep_bf16, out_dtype=jnp.bfloat16))
    np.testing.assert_allclose(np.asarray(out_bf16).astype(np.float32),
                               np.asarray(ref), rtol=6e-2, atol=6e-2)

    # 3) ragged batch (cdiv grid + in-kernel tail mask) and multi-step grid,
    #    including the megacore >=2-step split path.
    B2 = 40
    x2 = jax.random.normal(kx2, (B2, IN_F), jnp.float32)
    ref2 = _reference_forward(x2, params)
    out2 = jax.block_until_ready(
        residual_block_forward(x2, *prep_f32, out_dtype=jnp.float32, tile_m=16))
    np.testing.assert_allclose(np.asarray(out2), np.asarray(ref2),
                               rtol=1e-4, atol=1e-4)
    out2b = jax.block_until_ready(      # tile_m >> B -> split into 2 steps
        residual_block_forward(x2, *prep_f32, out_dtype=jnp.float32))
    np.testing.assert_allclose(np.asarray(out2b), np.asarray(ref2),
                               rtol=1e-4, atol=1e-4)

    print("KERNEL_OK")
</pallas_src>

<mosaic_0001>
module attributes {stable_mosaic.version = 11 : i64} {
  func.func @_residual_block_kernel(%arg0: i32, %arg1: memref<8x32xf32, #tpu.memory_space<vmem>>, %arg2: memref<32x128xf32, #tpu.memory_space<vmem>>, %arg3: memref<1x128xf32, #tpu.memory_space<vmem>>, %arg4: memref<64x64xf32, #tpu.memory_space<vmem>>, %arg5: memref<1x64xf32, #tpu.memory_space<vmem>>, %arg6: memref<8x64xf32, #tpu.memory_space<vmem>>) attributes {dimension_semantics = [#tpu.dimension_semantics<parallel>], iteration_bounds = array<i64: 1>, scalar_prefetch = 0 : i64, scratch_operands = 0 : i64, tpu.core_type = #tpu.core_type<tc>, window_params = [{transform_indices = @transform_0, window_bounds = array<i64: 8, 32>}, {pipeline_mode = #tpu.pipeline_mode<synchronous>, transform_indices = @transform_1, window_bounds = array<i64: 32, 128>}, {pipeline_mode = #tpu.pipeline_mode<synchronous>, transform_indices = @transform_2, window_bounds = array<i64: 1, 128>}, {pipeline_mode = #tpu.pipeline_mode<synchronous>, transform_indices = @transform_3, window_bounds = array<i64: 64, 64>}, {pipeline_mode = #tpu.pipeline_mode<synchronous>, transform_indices = @transform_4, window_bounds = array<i64: 1, 64>}, {transform_indices = @transform_5, window_bounds = array<i64: 8, 64>}]} {
    %c0 = arith.constant 0 : index
    %c0_0 = arith.constant 0 : index
    %0 = vector.load %arg1[%c0, %c0_0] : memref<8x32xf32, #tpu.memory_space<vmem>>, vector<8x32xf32>
    %c0_1 = arith.constant 0 : index
    %c0_2 = arith.constant 0 : index
    %1 = vector.load %arg2[%c0_1, %c0_2] : memref<32x128xf32, #tpu.memory_space<vmem>>, vector<32x128xf32>
    %cst = arith.constant dense<0.000000e+00> : vector<8x128xf32>
    %2 = tpu.matmul %0, %1, %cst {dimension_numbers = #tpu.dot_dimension_numbers<[1], [0], [0], [1], [0, 0, 1, 1], [], []>} : vector<8x32xf32>, vector<32x128xf32>, vector<8x128xf32> -> vector<8x128xf32>
    %c0_3 = arith.constant 0 : index
    %c0_4 = arith.constant 0 : index
    %3 = vector.load %arg3[%c0_3, %c0_4] : memref<1x128xf32, #tpu.memory_space<vmem>>, vector<1x128xf32>
    %4 = vector.broadcast %3 : vector<1x128xf32> to vector<8x128xf32>
    %5 = arith.addf %2, %4 : vector<8x128xf32>
    %6 = vector.extract_strided_slice %5 {offsets = [0, 0], sizes = [8, 64], strides = [1, 1]} : vector<8x128xf32> to vector<8x64xf32>
    %7 = vector.extract_strided_slice %5 {offsets = [0, 64], sizes = [8, 64], strides = [1, 1]} : vector<8x128xf32> to vector<8x64xf32>
    %cst_5 = arith.constant 0.000000e+00 : f32
    %8 = vector.broadcast %cst_5 : f32 to vector<8x64xf32>
    %9 = arith.cmpf ogt, %6, %8 : vector<8x64xf32>
    %cst_6 = arith.constant 1.000000e-01 : f32
    %10 = vector.broadcast %cst_6 : f32 to vector<8x64xf32>
    %11 = arith.mulf %10, %6 : vector<8x64xf32>
    %12 = arith.select %9, %6, %11 : vector<8x64xi1>, vector<8x64xf32>
    %c0_7 = arith.constant 0 : index
    %c0_8 = arith.constant 0 : index
    %13 = vector.load %arg4[%c0_7, %c0_8] : memref<64x64xf32, #tpu.memory_space<vmem>>, vector<64x64xf32>
    %cst_9 = arith.constant dense<0.000000e+00> : vector<8x64xf32>
    %14 = tpu.matmul %12, %13, %cst_9 {dimension_numbers = #tpu.dot_dimension_numbers<[1], [0], [0], [1], [0, 0, 1, 1], [], []>} : vector<8x64xf32>, vector<64x64xf32>, vector<8x64xf32> -> vector<8x64xf32>
    %c0_10 = arith.constant 0 : index
    %c0_11 = arith.constant 0 : index
    %15 = vector.load %arg5[%c0_10, %c0_11] : memref<1x64xf32, #tpu.memory_space<vmem>>, vector<1x64xf32>
    %16 = vector.broadcast %15 : vector<1x64xf32> to vector<8x64xf32>
    %17 = arith.addf %14, %16 : vector<8x64xf32>
    %cst_12 = arith.constant 0.000000e+00 : f32
    %18 = vector.broadcast %cst_12 : f32 to vector<8x64xf32>
    %19 = arith.cmpf ogt, %17, %18 : vector<8x64xf32>
    %cst_13 = arith.constant 1.000000e-01 : f32
    %20 = vector.broadcast %cst_13 : f32 to vector<8x64xf32>
    %21 = arith.mulf %20, %17 : vector<8x64xf32>
    %22 = arith.select %19, %17, %21 : vector<8x64xi1>, vector<8x64xf32>
    %23 = arith.addf %22, %7 : vector<8x64xf32>
    %c0_14 = arith.constant 0 : index
    %c0_15 = arith.constant 0 : index
    %24 = vector.load %arg6[%c0_14, %c0_15] : memref<8x64xf32, #tpu.memory_space<vmem>>, vector<8x64xf32>
    tpu.vector_store %arg6[%c0_14, %c0_15], %23 {strides = array<i32>} : memref<8x64xf32, #tpu.memory_space<vmem>>, vector<8x64xf32>,
    return
  }
  func.func @transform_0(%arg0: i32) -> (i32, i32) {
    %c0_i32 = arith.constant 0 : i32
    %c0_i32_0 = arith.constant 0 : i32
    return %arg0, %c0_i32 : i32, i32
  }
  func.func @transform_1(%arg0: i32) -> (i32, i32) {
    %c0_i32 = arith.constant 0 : i32
    %c0_i32_0 = arith.constant 0 : i32
    %c0_i32_1 = arith.constant 0 : i32
    return %c0_i32, %c0_i32_0 : i32, i32
  }
  func.func @transform_2(%arg0: i32) -> (i32, i32) {
    %c0_i32 = arith.constant 0 : i32
    %c0_i32_0 = arith.constant 0 : i32
    %c0_i32_1 = arith.constant 0 : i32
    return %c0_i32, %c0_i32_0 : i32, i32
  }
  func.func @transform_3(%arg0: i32) -> (i32, i32) {
    %c0_i32 = arith.constant 0 : i32
    %c0_i32_0 = arith.constant 0 : i32
    %c0_i32_1 = arith.constant 0 : i32
    return %c0_i32, %c0_i32_0 : i32, i32
  }
  func.func @transform_4(%arg0: i32) -> (i32, i32) {
    %c0_i32 = arith.constant 0 : i32
    %c0_i32_0 = arith.constant 0 : i32
    %c0_i32_1 = arith.constant 0 : i32
    return %c0_i32, %c0_i32_0 : i32, i32
  }
  func.func @transform_5(%arg0: i32) -> (i32, i32) {
    %c0_i32 = arith.constant 0 : i32
    %c0_i32_0 = arith.constant 0 : i32
    return %arg0, %c0_i32 : i32, i32
  }
}

</mosaic_0001>

<llo_original>
// kernel: residual_block_forward.1
$region0: #{residual_block_forward.1}
  #allocation0 [shape = 'u32[]', space=smem, size = 0x4, offset = 0x4, fixed_abs, tag = 'smem constant byte address 0x4 - core index']
  #allocation1 [shape = 'u32[72,128]{1,0:T(1,128)}', space=vmem, size = 0x9000, scoped, tag = 'internal scratch']
  %s0 = inlined_call_operand.hbm [shape: f32[8,32], index: 0, kind: input, shape index: {}]
  %s1 = inlined_call_operand.hbm [shape: f32[32,128], index: 1, kind: input, shape index: {}]
  %s2 = inlined_call_operand.vmem [shape: f32[1,128], index: 2, kind: input, shape index: {}]
  %s3 = inlined_call_operand.hbm [shape: f32[64,64], index: 3, kind: input, shape index: {}]
  %s4 = inlined_call_operand.vmem [shape: f32[1,64], index: 4, kind: input, shape index: {}]
  %s5 = inlined_call_operand.hbm [shape: f32[8,64], index: 5, kind: output, shape index: {}]
  %s6 = sld [smem:[#allocation0]]
  $region42: #{residual_block_forward.1} parent=0
    _
  %s8 = ssub.s32 1, %s6
  %s9 = scalar_select 0, %s8, %s6
  $region1: #{residual_block_forward.1} parent=0
    #allocation2 [shape = 'u8[4096]{0}', space=vmem, size = 0x1000, scoped, tag = 'input window, operand 0, single buffered']
    #allocation3 [shape = 's32[1]{0}', space=sflag, size = 0x4, scoped, tag = 'scoped memory for residual_block_forward.1']
    #allocation4 [shape = 's32[1]{0}', space=sflag, size = 0x4, scoped, tag = 'scoped memory for residual_block_forward.1']
    #allocation5 [shape = 'u8[16384]{0}', space=vmem, size = 0x4000, scoped, tag = 'input window, operand 1, single buffered']
    #allocation6 [shape = 's32[1]{0}', space=sflag, size = 0x4, scoped, tag = 'scoped memory for residual_block_forward.1']
    #allocation7 [shape = 'u8[32768]{0}', space=vmem, size = 0x8000, scoped, tag = 'input window, operand 3, single buffered']
    #allocation8 [shape = 'u8[4096]{0}', space=vmem, size = 0x1000, scoped, tag = 'output window, operand 0, single buffered']
    %10 = vsyncpa [#allocation3], 0
    %11 = vsyncpa [#allocation6], 0
    %12 = vsyncpa [#allocation4], 0
    // Predicated region
    $region2: #{residual_block_forward.1} parent=1 // pred_check
      _
    $region3: #{residual_block_forward.1} parent=1 // pred_check_branch
      %14 = sbr.rel (0) target = $region5
    $region4: #{residual_block_forward.1} parent=1 // pred_region
      %16 = vsyncadd [#allocation3], 0
      %s18 = sshll.u32 %s0, 4
      %s19 = int_to_ptr.hbm [resolvable:$true] %s18
      %s20 = sshll.u32 [#allocation2], 4
      %s21 = int_to_ptr.vmem [resolvable:$true] %s20
      %23 = dma.hbm_to_vmem [thread:$0]  %s19, 128, %s21, [#allocation3]
    $region5: #{residual_block_forward.1} parent=1 // pred_fallthru
      _
    // Predicated region
    $region6: #{residual_block_forward.1} parent=1 // pred_check
      _
    $region7: #{residual_block_forward.1} parent=1 // pred_check_branch
      %25 = sbr.rel (0) target = $region9
    $region8: #{residual_block_forward.1} parent=1 // pred_region
      %27 = vsyncadd [#allocation6], 0
      %s28 = sshll.u32 %s1, 4
      %s29 = int_to_ptr.hbm [resolvable:$true] %s28
      %s30 = sshll.u32 [#allocation5], 4
      %s31 = int_to_ptr.vmem [resolvable:$true] %s30
      %36 = dma.hbm_to_vmem [thread:$0]  %s29, 512, %s31, [#allocation6], 128, 128, 8
    $region9: #{residual_block_forward.1} parent=1 // pred_fallthru
      _
    // Predicated region
    $region10: #{residual_block_forward.1} parent=1 // pred_check
      _
    $region11: #{residual_block_forward.1} parent=1 // pred_check_branch
      %38 = sbr.rel (0) target = $region13
    $region12: #{residual_block_forward.1} parent=1 // pred_region
      _
    $region13: #{residual_block_forward.1} parent=1 // pred_fallthru
      _
    // Predicated region
    $region14: #{residual_block_forward.1} parent=1 // pred_check
      _
    $region15: #{residual_block_forward.1} parent=1 // pred_check_branch
      %40 = sbr.rel (0) target = $region17
    $region16: #{residual_block_forward.1} parent=1 // pred_region
      %42 = vsyncadd [#allocation6], 0
      %s43 = sshll.u32 %s3, 4
      %s44 = int_to_ptr.hbm [resolvable:$true] %s43
      %s45 = sshll.u32 [#allocation7], 4
      %s46 = int_to_ptr.vmem [resolvable:$true] %s45
      %51 = dma.hbm_to_vmem [thread:$0]  %s44, 1024, %s46, [#allocation6], 128, 128, 8
    $region17: #{residual_block_forward.1} parent=1 // pred_fallthru
      _
    // Predicated region
    $region18: #{residual_block_forward.1} parent=1 // pred_check
      _
    $region19: #{residual_block_forward.1} parent=1 // pred_check_branch
      %53 = sbr.rel (0) target = $region21
    $region20: #{residual_block_forward.1} parent=1 // pred_region
      _
    $region21: #{residual_block_forward.1} parent=1 // pred_fallthru
      _
    // Predicated region
    $region22: #{residual_block_forward.1} parent=1 // pred_check
      _
    $region23: #{residual_block_forward.1} parent=1 // pred_check_branch
      %55 = sbr.rel (0) target = $region25
    $region24: #{residual_block_forward.1} parent=1 // pred_region
      %57 = dma.done [#allocation3], 128
    $region25: #{residual_block_forward.1} parent=1 // pred_fallthru
      _
    // Predicated region
    $region26: #{residual_block_forward.1} parent=1 // pred_check
      _
    $region27: #{residual_block_forward.1} parent=1 // pred_check_branch
      %59 = sbr.rel (0) target = $region29
    $region28: #{residual_block_forward.1} parent=1 // pred_region
      %61 = dma.done [#allocation6], 512
    $region29: #{residual_block_forward.1} parent=1 // pred_fallthru
      _
    // Predicated region
    $region30: #{residual_block_forward.1} parent=1 // pred_check
      _
    $region31: #{residual_block_forward.1} parent=1 // pred_check_branch
      %63 = sbr.rel (0) target = $region33
    $region32: #{residual_block_forward.1} parent=1 // pred_region
      %65 = dma.done [#allocation6], 1024
    $region33: #{residual_block_forward.1} parent=1 // pred_fallthru
      _
    %v66 = vld [vmem:[#allocation2] sm:$0xff]
    %v67 = vld [vmem:[#allocation5] sm:$0xff]
    %v68 = vld [vmem:[#allocation5 + $0x8] sm:$0xff]
    %v69 = vld [vmem:[#allocation5 + $0x10] sm:$0xff]
    %v70 = vld [vmem:[#allocation5 + $0x18] sm:$0xff]
    %v71 = vld [vmem:[%s2] sm:$0x1]
    %v73 = vperm.slane %v71, 0
    %vm75 = vcmask 261120
    %v77 = vsel %vm75, %v66, 0
    %79 = vmatpush.msra.mxu0 0.0
    %80 = vmatpush.msra.mxu0 0.0
    %81 = vmatpush.msra.mxu0 0.0
    %82 = vmatpush.msra.mxu0 0.0
    %83 = vmatpush.msra.mxu0 0.0
    %84 = vmatpush.msra.mxu0 0.0
    %85 = vmatpush.msra.mxu0 0.0
    %86 = vmatpush.msra.mxu0 0.0
    %87 = vmatpush.msra.mxu0 0.0
    %88 = vmatpush.msra.mxu0 0.0
    %89 = vmatpush.msra.mxu0 0.0
    %90 = vmatpush.msra.mxu0 0.0
    %91 = vmatpush.msra.mxu0 %v70
    %92 = vmatpush.msra.mxu0 %v69
    %93 = vmatpush.msra.mxu0 %v68
    %94 = vmatpush.msra.mxu0 %v67
    %95 = vmatmul.f32.gmra.mxu0 %v77
    %v96 = vpop.f32.mrf.mxu0
    %v97 = vadd.f32 %v73, %v96
    %98 = vdwg.mxu0
    %vm99 = vcmp.gt.f32.partialorder %v97, 0.0
    %v100 = vmul.f32 %v97, 0.1
    %v101 = vsel %vm99, %v97, %v100
    %v102 = vld [vmem:[#allocation7] sm:$0xff]
    %v103 = vld [vmem:[#allocation7 + $0x8] sm:$0xff]
    %v104 = vld [vmem:[#allocation7 + $0x10] sm:$0xff]
    %v105 = vld [vmem:[#allocation7 + $0x18] sm:$0xff]
    %v106 = vld [vmem:[#allocation7 + $0x20] sm:$0xff]
    %v107 = vld [vmem:[#allocation7 + $0x28] sm:$0xff]
    %v108 = vld [vmem:[#allocation7 + $0x30] sm:$0xff]
    %v109 = vld [vmem:[#allocation7 + $0x38] sm:$0xff]
    %v110 = vld [vmem:[%s4] sm:$0x1]
    %v112 = vperm.slane %v110, 0
    %vm114 = vcmask 523264
    %v116 = vsel %vm114, %v101, 0
    %118 = vmatpush.msra.mxu0 0.0
    %119 = vmatpush.msra.mxu0 0.0
    %120 = vmatpush.msra.mxu0 0.0
    %121 = vmatpush.msra.mxu0 0.0
    %122 = vmatpush.msra.mxu0 0.0
    %123 = vmatpush.msra.mxu0 0.0
    %124 = vmatpush.msra.mxu0 0.0
    %125 = vmatpush.msra.mxu0 0.0
    %126 = vmatpush.msra.mxu0 %v109
    %127 = vmatpush.msra.mxu0 %v108
    %128 = vmatpush.msra.mxu0 %v107
    %129 = vmatpush.msra.mxu0 %v106
    %130 = vmatpush.msra.mxu0 %v105
    %131 = vmatpush.msra.mxu0 %v104
    %132 = vmatpush.msra.mxu0 %v103
    %133 = vmatpush.msra.mxu0 %v102
    %134 = vmatmul.f32.gmra.mxu0 %v116
    %v135 = vpop.f32.mrf.mxu0
    %v136 = vadd.f32 %v112, %v135
    %137 = vdwg.mxu0
    %vm138 = vcmp.gt.f32.partialorder %v136, 0.0
    %v139 = vmul.f32 %v136, 0.1
    %v140 = vsel %vm138, %v136, %v139
    %142 = vrot.lane.b32.xlu0 %v97, 64
    %v143 = vpop.permute.xlu0 %142
    %v145 = vadd.f32 %v140, %v143
    %146 = vst.msk [vmem:[#allocation8] sm:$0xff] %vm114, %v145
    // Predicated region
    $region34: #{residual_block_forward.1} parent=1 // pred_check
      _
    $region35: #{residual_block_forward.1} parent=1 // pred_check_branch
      %148 = sbr.rel (0) target = $region37
    $region36: #{residual_block_forward.1} parent=1 // pred_region
      %150 = vsyncadd [#allocation4], 0
      %s152 = sshll.u32 [#allocation8], 4
      %s153 = int_to_ptr.vmem [resolvable:$true] %s152
      %s154 = sshll.u32 %s5, 4
      %s155 = int_to_ptr.hbm [resolvable:$true] %s154
      %157 = dma.vmem_to_hbm [thread:$0]  %s153, 128, %s155, [#allocation4]
    $region37: #{residual_block_forward.1} parent=1 // pred_fallthru
      _
    // Predicated region
    $region38: #{residual_block_forward.1} parent=1 // pred_check
      _
    $region39: #{residual_block_forward.1} parent=1 // pred_check_branch
      %159 = sbr.rel (0) target = $region41
    $region40: #{residual_block_forward.1} parent=1 // pred_region
      %161 = dma.done [#allocation4], 128
    $region41: #{residual_block_forward.1} parent=1 // pred_fallthru
      _
    %162 = vsyncpa [#allocation3], 1
    %163 = vsyncpa [#allocation6], 1
    %164 = vsyncpa [#allocation4], 1

</llo_original>
